<compile_context>
chip_gen: v6e
topology: v6e:2x2x1
jax: 0.10.0
libtpu: 0.0.40
codegen_flags: <defaults>
</compile_context>

<pallas_src>
import functools

import jax
import jax.numpy as jnp
from jax import lax
from jax.experimental import pallas as pl
from jax.experimental.pallas import tpu as pltpu

# ---------- padded layout constants ----------
A1_PAD = 256                  # actor hidden 200 -> 256 lanes
C1_PAD = 128                  # critic hidden 100 -> 128 lanes
TRUNK_PAD = A1_PAD + C1_PAD   # 384: fused trunk width (a1 | c1)
OUT_PAD = 128                 # packed output slab: [mu | sigma | value | 0...]
AUX_W = TRUNK_PAD + OUT_PAD   # 512: width of the fused constant/bias array


def _softplus(x):
    # numerically stable softplus: max(x,0) + log1p(exp(-|x|))
    return jnp.maximum(x, 0.0) + jnp.log1p(jnp.exp(-jnp.abs(x)))


# ---------- Pallas kernel: full forward pass ----------
def net_forward_kernel(x_ref, aux_ref, w_head_ref, out_ref, *, s_dim, a_dim):
    """
    x_ref      : [bt, s_dim]        f32
    aux_ref    : [s_dim + 1, 512]   f32
                 rows 0..s_dim-1, cols 0:384   = trunk weights (a1 | c1)
                 row  s_dim,      cols 0:384   = trunk bias    (a1 | c1)
                 row  s_dim,      cols 384:512 = head bias     (mu | sigma | v)
    w_head_ref : [384, 128]         bf16 (mu | sigma | value columns)
    out_ref    : [bt, 128]          bf16 packed (mu | sigma | value | 0...)
    """
    x = x_ref[...]                                    # [bt, s_dim]
    aux = aux_ref[...]                                # [s_dim+1, 512]

    # --- trunk (a1 | c1) on the VPU: K = s_dim is tiny, keep it off the MXU --
    acc = aux[s_dim:s_dim + 1, :TRUNK_PAD]            # [1, 384] trunk bias
    for k in range(s_dim):                            # static unroll
        acc = acc + x[:, k:k + 1] * aux[k:k + 1, :TRUNK_PAD]
    trunk = jnp.clip(acc, 0.0, 6.0)                   # relu6, [bt, 384]
    # pad columns have zero weight & bias -> relu6(0) = 0, so pads stay zero.

    # --- single MXU matmul (bf16 in, f32 acc): mu | sigma | value preacts ----
    head = jnp.dot(trunk.astype(jnp.bfloat16), w_head_ref[...],
                   preferred_element_type=jnp.float32)
    head = head + aux[s_dim:s_dim + 1, TRUNK_PAD:]    # [bt, 128]

    mu_all = 2.0 * jnp.tanh(head)
    sigma_all = _softplus(head) + 0.001

    # per-lane select: [0, a_dim) -> mu, [a_dim, 2a_dim) -> sigma, rest -> raw
    # (lane 2*a_dim carries the value; higher lanes are zero and discarded).
    col = lax.broadcasted_iota(jnp.int32, (1, OUT_PAD), 1)
    out = jnp.where(col < a_dim, mu_all,
                    jnp.where(col < 2 * a_dim, sigma_all, head))
    out_ref[...] = out.astype(out_ref.dtype)


# ---------- host-side packing (call ONCE per parameter update) ----------
def pack_params(p, s_dim, a_dim):
    """Pack logical Linear params into the fused/padded kernel layout.

    Weights in `p` are stored pre-transposed as [in, out].
    """
    assert s_dim >= 1
    assert a_dim >= 1 and 2 * a_dim + 1 <= OUT_PAD, "requires 2*a_dim+1 <= 128"

    aux = jnp.zeros((s_dim + 1, AUX_W), jnp.float32)
    aux = aux.at[:s_dim, :200].set(p["w_a1"].astype(jnp.float32))
    aux = aux.at[:s_dim, A1_PAD:A1_PAD + 100].set(p["w_c1"].astype(jnp.float32))
    aux = aux.at[s_dim, :200].set(p["b_a1"].astype(jnp.float32))
    aux = aux.at[s_dim, A1_PAD:A1_PAD + 100].set(p["b_c1"].astype(jnp.float32))
    aux = aux.at[s_dim, TRUNK_PAD:TRUNK_PAD + a_dim].set(
        p["b_mu"].astype(jnp.float32))
    aux = aux.at[s_dim, TRUNK_PAD + a_dim:TRUNK_PAD + 2 * a_dim].set(
        p["b_sg"].astype(jnp.float32))
    aux = aux.at[s_dim, TRUNK_PAD + 2 * a_dim].set(
        p["b_v"].reshape(()).astype(jnp.float32))

    w_head = jnp.zeros((TRUNK_PAD, OUT_PAD), jnp.float32)
    w_head = w_head.at[:200, :a_dim].set(p["w_mu"])
    w_head = w_head.at[:200, a_dim:2 * a_dim].set(p["w_sg"])
    w_head = w_head.at[A1_PAD:A1_PAD + 100, 2 * a_dim].set(p["w_v"].reshape(100))
    w_head = w_head.astype(jnp.bfloat16)

    return dict(aux=aux, w_head=w_head)


# ---------- wrapper ----------
@functools.partial(jax.jit, static_argnames=("a_dim", "batch_tile"))
def net_forward(x, packed, a_dim, *, batch_tile=1024):
    """Forward pass. `packed` is the output of pack_params (packed once)."""
    B, s_dim = x.shape
    assert batch_tile % 8 == 0

    # Batch tile: one block for small B (rounded up to a sublane multiple),
    # otherwise fixed `batch_tile`-row blocks with a zero-padded last tile.
    if B <= batch_tile:
        bt = max(8, ((B + 7) // 8) * 8)
    else:
        bt = batch_tile
    n_tiles = pl.cdiv(B, bt)
    B_pad = n_tiles * bt
    if B_pad != B:
        x = jnp.pad(x, ((0, B_pad - B), (0, 0)))

    out = pl.pallas_call(
        functools.partial(net_forward_kernel, s_dim=s_dim, a_dim=a_dim),
        out_shape=jax.ShapeDtypeStruct((B_pad, OUT_PAD), jnp.bfloat16),
        grid=(n_tiles,),
        in_specs=[
            pl.BlockSpec((bt, s_dim), lambda i: (i, 0)),           # x
            pl.BlockSpec((s_dim + 1, AUX_W), lambda i: (0, 0)),    # aux consts
            pl.BlockSpec((TRUNK_PAD, OUT_PAD), lambda i: (0, 0)),  # w_head bf16
        ],
        out_specs=pl.BlockSpec((bt, OUT_PAD), lambda i: (i, 0)),
        compiler_params=pltpu.CompilerParams(
            dimension_semantics=("parallel",)),
    )(x, packed["aux"], packed["w_head"])

    out = out[:B].astype(jnp.float32)
    mu = out[:, :a_dim]
    sigma = out[:, a_dim:2 * a_dim]
    values = out[:, 2 * a_dim:2 * a_dim + 1]
    return mu, sigma, values


# ---------- parameter init (set_init uses N(0, 0.1) weights; random biases
# here so the correctness check also exercises bias packing) ----------
def init_params(key, s_dim, a_dim):
    ks = jax.random.split(key, 10)
    std = 0.1

    def w(k, shape):
        return (std * jax.random.normal(k, shape)).astype(jnp.float32)

    # weights stored pre-transposed as [in, out]
    return {
        "w_a1": w(ks[0], (s_dim, 200)), "b_a1": w(ks[5], (200,)),
        "w_mu": w(ks[1], (200, a_dim)), "b_mu": w(ks[6], (a_dim,)),
        "w_sg": w(ks[2], (200, a_dim)), "b_sg": w(ks[7], (a_dim,)),
        "w_c1": w(ks[3], (s_dim, 100)), "b_c1": w(ks[8], (100,)),
        "w_v":  w(ks[4], (100, 1)),     "b_v":  w(ks[9], (1,)),
    }


# ---------- pure-JAX reference for verification ----------
def net_forward_ref(x, p):
    a1 = jnp.clip(x @ p["w_a1"] + p["b_a1"], 0.0, 6.0)
    mu = 2.0 * jnp.tanh(a1 @ p["w_mu"] + p["b_mu"])
    sigma = jax.nn.softplus(a1 @ p["w_sg"] + p["b_sg"]) + 0.001
    c1 = jnp.clip(x @ p["w_c1"] + p["b_c1"], 0.0, 6.0)
    values = c1 @ p["w_v"] + p["b_v"]
    return mu, sigma, values


if __name__ == "__main__":
    key = jax.random.PRNGKey(0)
    k_x, k_p, k_x2 = jax.random.split(key, 3)

    s_dim, a_dim = 4, 2
    params = init_params(k_p, s_dim, a_dim)
    packed = pack_params(params, s_dim, a_dim)   # packed once, outside forward

    tol = 3e-2   # bf16 matmul operands + bf16 output slab (fine for A3C)

    # A3C-sized batch (single-block path).
    B = 8
    x = jax.random.normal(k_x, (B, s_dim), dtype=jnp.float32)
    mu, sigma, values = jax.block_until_ready(net_forward(x, packed, a_dim=a_dim))
    mu_r, sg_r, v_r = net_forward_ref(x, params)
    assert mu.shape == (B, a_dim) and sigma.shape == (B, a_dim) and values.shape == (B, 1)
    assert jnp.allclose(mu, mu_r, atol=tol), float(jnp.max(jnp.abs(mu - mu_r)))
    assert jnp.allclose(sigma, sg_r, atol=tol), float(jnp.max(jnp.abs(sigma - sg_r)))
    assert jnp.allclose(values, v_r, atol=tol), float(jnp.max(jnp.abs(values - v_r)))
    assert bool(jnp.all(sigma > 0.0))

    # Multi-step grid with a non-divisible batch (exercises padding + tiling).
    B2 = 40
    x2 = jax.random.normal(k_x2, (B2, s_dim), dtype=jnp.float32)
    mu2, sg2, v2 = jax.block_until_ready(
        net_forward(x2, packed, a_dim=a_dim, batch_tile=16))
    mu2_r, sg2_r, v2_r = net_forward_ref(x2, params)
    assert mu2.shape == (B2, a_dim) and sg2.shape == (B2, a_dim) and v2.shape == (B2, 1)
    assert jnp.allclose(mu2, mu2_r, atol=tol), float(jnp.max(jnp.abs(mu2 - mu2_r)))
    assert jnp.allclose(sg2, sg2_r, atol=tol), float(jnp.max(jnp.abs(sg2 - sg2_r)))
    assert jnp.allclose(v2, v2_r, atol=tol), float(jnp.max(jnp.abs(v2 - v2_r)))

    print("KERNEL_OK")
</pallas_src>

<mosaic_0001>
module attributes {stable_mosaic.version = 11 : i64} {
  func.func @net_forward_kernel(%arg0: i32, %arg1: memref<8x4xf32, #tpu.memory_space<vmem>>, %arg2: memref<5x512xf32, #tpu.memory_space<vmem>>, %arg3: memref<384x128xbf16, #tpu.memory_space<vmem>>, %arg4: memref<8x128xbf16, #tpu.memory_space<vmem>>) attributes {dimension_semantics = [#tpu.dimension_semantics<parallel>], iteration_bounds = array<i64: 1>, scalar_prefetch = 0 : i64, scratch_operands = 0 : i64, tpu.core_type = #tpu.core_type<tc>, window_params = [{transform_indices = @transform_0, window_bounds = array<i64: 8, 4>}, {pipeline_mode = #tpu.pipeline_mode<synchronous>, transform_indices = @transform_1, window_bounds = array<i64: 5, 512>}, {pipeline_mode = #tpu.pipeline_mode<synchronous>, transform_indices = @transform_2, window_bounds = array<i64: 384, 128>}, {transform_indices = @transform_3, window_bounds = array<i64: 8, 128>}]} {
    %c0 = arith.constant 0 : index
    %c0_0 = arith.constant 0 : index
    %0 = vector.load %arg1[%c0, %c0_0] : memref<8x4xf32, #tpu.memory_space<vmem>>, vector<8x4xf32>
    %c0_1 = arith.constant 0 : index
    %c0_2 = arith.constant 0 : index
    %1 = vector.load %arg2[%c0_1, %c0_2] : memref<5x512xf32, #tpu.memory_space<vmem>>, vector<5x512xf32>
    %2 = vector.extract_strided_slice %1 {offsets = [4, 0], sizes = [1, 384], strides = [1, 1]} : vector<5x512xf32> to vector<1x384xf32>
    %3 = vector.extract_strided_slice %0 {offsets = [0, 0], sizes = [8, 1], strides = [1, 1]} : vector<8x4xf32> to vector<8x1xf32>
    %4 = vector.extract_strided_slice %1 {offsets = [0, 0], sizes = [1, 384], strides = [1, 1]} : vector<5x512xf32> to vector<1x384xf32>
    %5 = vector.broadcast %3 : vector<8x1xf32> to vector<8x384xf32>
    %6 = vector.broadcast %4 : vector<1x384xf32> to vector<8x384xf32>
    %7 = arith.mulf %5, %6 : vector<8x384xf32>
    %8 = vector.broadcast %2 : vector<1x384xf32> to vector<8x384xf32>
    %9 = arith.addf %8, %7 : vector<8x384xf32>
    %10 = vector.extract_strided_slice %0 {offsets = [0, 1], sizes = [8, 1], strides = [1, 1]} : vector<8x4xf32> to vector<8x1xf32>
    %11 = vector.extract_strided_slice %1 {offsets = [1, 0], sizes = [1, 384], strides = [1, 1]} : vector<5x512xf32> to vector<1x384xf32>
    %12 = vector.broadcast %10 : vector<8x1xf32> to vector<8x384xf32>
    %13 = vector.broadcast %11 : vector<1x384xf32> to vector<8x384xf32>
    %14 = arith.mulf %12, %13 : vector<8x384xf32>
    %15 = arith.addf %9, %14 : vector<8x384xf32>
    %16 = vector.extract_strided_slice %0 {offsets = [0, 2], sizes = [8, 1], strides = [1, 1]} : vector<8x4xf32> to vector<8x1xf32>
    %17 = vector.extract_strided_slice %1 {offsets = [2, 0], sizes = [1, 384], strides = [1, 1]} : vector<5x512xf32> to vector<1x384xf32>
    %18 = vector.broadcast %16 : vector<8x1xf32> to vector<8x384xf32>
    %19 = vector.broadcast %17 : vector<1x384xf32> to vector<8x384xf32>
    %20 = arith.mulf %18, %19 : vector<8x384xf32>
    %21 = arith.addf %15, %20 : vector<8x384xf32>
    %22 = vector.extract_strided_slice %0 {offsets = [0, 3], sizes = [8, 1], strides = [1, 1]} : vector<8x4xf32> to vector<8x1xf32>
    %23 = vector.extract_strided_slice %1 {offsets = [3, 0], sizes = [1, 384], strides = [1, 1]} : vector<5x512xf32> to vector<1x384xf32>
    %24 = vector.broadcast %22 : vector<8x1xf32> to vector<8x384xf32>
    %25 = vector.broadcast %23 : vector<1x384xf32> to vector<8x384xf32>
    %26 = arith.mulf %24, %25 : vector<8x384xf32>
    %27 = arith.addf %21, %26 : vector<8x384xf32>
    %cst = arith.constant 0.000000e+00 : f32
    %cst_3 = arith.constant 6.000000e+00 : f32
    %28 = vector.broadcast %cst : f32 to vector<8x384xf32>
    %29 = arith.maximumf %28, %27 : vector<8x384xf32>
    %30 = vector.broadcast %cst_3 : f32 to vector<8x384xf32>
    %31 = arith.minimumf %30, %29 : vector<8x384xf32>
    %32 = arith.truncf %31 : vector<8x384xf32> to vector<8x384xbf16>
    %c0_4 = arith.constant 0 : index
    %c0_5 = arith.constant 0 : index
    %33 = vector.load %arg3[%c0_4, %c0_5] : memref<384x128xbf16, #tpu.memory_space<vmem>>, vector<384x128xbf16>
    %cst_6 = arith.constant dense<0.000000e+00> : vector<8x128xf32>
    %34 = tpu.matmul %32, %33, %cst_6 {dimension_numbers = #tpu.dot_dimension_numbers<[1], [0], [0], [1], [0, 0, 1, 1], [], []>} : vector<8x384xbf16>, vector<384x128xbf16>, vector<8x128xf32> -> vector<8x128xf32>
    %35 = vector.extract_strided_slice %1 {offsets = [4, 384], sizes = [1, 128], strides = [1, 1]} : vector<5x512xf32> to vector<1x128xf32>
    %36 = vector.broadcast %35 : vector<1x128xf32> to vector<8x128xf32>
    %37 = arith.addf %34, %36 : vector<8x128xf32>
    %38 = math.tanh %37 : vector<8x128xf32>
    %cst_7 = arith.constant 2.000000e+00 : f32
    %39 = vector.broadcast %cst_7 : f32 to vector<8x128xf32>
    %40 = arith.mulf %39, %38 : vector<8x128xf32>
    %cst_8 = arith.constant 0.000000e+00 : f32
    %41 = vector.broadcast %cst_8 : f32 to vector<8x128xf32>
    %42 = arith.maximumf %37, %41 : vector<8x128xf32>
    %43 = math.absf %37 : vector<8x128xf32>
    %cst_9 = arith.constant 0.000000e+00 : f32
    %44 = vector.broadcast %cst_9 : f32 to vector<8x128xf32>
    %45 = arith.subf %44, %43 : vector<8x128xf32>
    %46 = math.exp %45 : vector<8x128xf32>
    %47 = math.log1p %46 : vector<8x128xf32>
    %48 = arith.addf %42, %47 : vector<8x128xf32>
    %cst_10 = arith.constant 1.000000e-03 : f32
    %49 = vector.broadcast %cst_10 : f32 to vector<8x128xf32>
    %50 = arith.addf %48, %49 : vector<8x128xf32>
    %51 = tpu.iota {dimensions = array<i32: 1>} : vector<1x128xi32>
    %c2_i32 = arith.constant 2 : i32
    %52 = vector.broadcast %c2_i32 : i32 to vector<1x128xi32>
    %53 = arith.cmpi slt, %51, %52 : vector<1x128xi32>
    %c4_i32 = arith.constant 4 : i32
    %54 = vector.broadcast %c4_i32 : i32 to vector<1x128xi32>
    %55 = arith.cmpi slt, %51, %54 : vector<1x128xi32>
    %56 = vector.shape_cast %55 : vector<1x128xi1> to vector<1x128xi1>
    %57 = vector.broadcast %56 : vector<1x128xi1> to vector<8x128xi1>
    %58 = arith.select %57, %50, %37 : vector<8x128xi1>, vector<8x128xf32>
    %59 = vector.shape_cast %53 : vector<1x128xi1> to vector<1x128xi1>
    %60 = vector.broadcast %59 : vector<1x128xi1> to vector<8x128xi1>
    %61 = arith.select %60, %40, %58 : vector<8x128xi1>, vector<8x128xf32>
    %62 = arith.truncf %61 : vector<8x128xf32> to vector<8x128xbf16>
    %c0_11 = arith.constant 0 : index
    %c0_12 = arith.constant 0 : index
    %63 = vector.load %arg4[%c0_11, %c0_12] : memref<8x128xbf16, #tpu.memory_space<vmem>>, vector<8x128xbf16>
    tpu.vector_store %arg4[%c0_11, %c0_12], %62 {strides = array<i32>} : memref<8x128xbf16, #tpu.memory_space<vmem>>, vector<8x128xbf16>,
    return
  }
  func.func @transform_0(%arg0: i32) -> (i32, i32) {
    %c0_i32 = arith.constant 0 : i32
    %c0_i32_0 = arith.constant 0 : i32
    return %arg0, %c0_i32 : i32, i32
  }
  func.func @transform_1(%arg0: i32) -> (i32, i32) {
    %c0_i32 = arith.constant 0 : i32
    %c0_i32_0 = arith.constant 0 : i32
    %c0_i32_1 = arith.constant 0 : i32
    return %c0_i32, %c0_i32_0 : i32, i32
  }
  func.func @transform_2(%arg0: i32) -> (i32, i32) {
    %c0_i32 = arith.constant 0 : i32
    %c0_i32_0 = arith.constant 0 : i32
    %c0_i32_1 = arith.constant 0 : i32
    return %c0_i32, %c0_i32_0 : i32, i32
  }
  func.func @transform_3(%arg0: i32) -> (i32, i32) {
    %c0_i32 = arith.constant 0 : i32
    %c0_i32_0 = arith.constant 0 : i32
    return %arg0, %c0_i32 : i32, i32
  }
}

</mosaic_0001>

<llo_original>
// kernel: net_forward.1
$region0: #{net_forward.1}
  #allocation0 [shape = 'u32[]', space=smem, size = 0x4, offset = 0x4, fixed_abs, tag = 'smem constant byte address 0x4 - core index']
  #allocation1 [shape = 'u32[144,128]{1,0:T(1,128)}', space=vmem, size = 0x12000, scoped, tag = 'internal scratch']
  %s0 = inlined_call_operand.vmem [shape: f32[8,4], index: 0, kind: input, shape index: {}]
  %s1 = inlined_call_operand.hbm [shape: f32[5,512], index: 1, kind: input, shape index: {}]
  %s2 = inlined_call_operand.hbm [shape: bf16[384,128], index: 2, kind: input, shape index: {}]
  %s3 = inlined_call_operand.vmem [shape: bf16[8,128], index: 3, kind: output, shape index: {}]
  %s4 = sld [smem:[#allocation0]]
  $region30: #{net_forward.1} parent=0
    _
  %s6 = ssub.s32 1, %s4
  %s7 = scalar_select 0, %s6, %s4
  $region1: #{net_forward.1} parent=0
    #allocation2 [shape = 'u8[16384]{0}', space=vmem, size = 0x4000, scoped, tag = 'input window, operand 1, single buffered']
    #allocation3 [shape = 's32[1]{0}', space=sflag, size = 0x4, scoped, tag = 'scoped memory for net_forward.1']
    #allocation4 [shape = 'u8[98304]{0}', space=vmem, size = 0x18000, scoped, tag = 'input window, operand 2, single buffered']
    #allocation5 [shape = 's32[1]{0}', space=sflag, size = 0x4, scoped, tag = 'scoped memory for net_forward.1']
    %8 = vsyncpa [#allocation3], 0
    %9 = vsyncpa [#allocation5], 0
    // Predicated region
    $region2: #{net_forward.1} parent=1 // pred_check
      _
    $region3: #{net_forward.1} parent=1 // pred_check_branch
      %11 = sbr.rel (0) target = $region5
    $region4: #{net_forward.1} parent=1 // pred_region
      _
    $region5: #{net_forward.1} parent=1 // pred_fallthru
      _
    // Predicated region
    $region6: #{net_forward.1} parent=1 // pred_check
      _
    $region7: #{net_forward.1} parent=1 // pred_check_branch
      %13 = sbr.rel (0) target = $region9
    $region8: #{net_forward.1} parent=1 // pred_region
      %s15 = ssub.s32 512, 512
      %16 = vsyncadd [#allocation3], %s15
      %s18 = sshll.u32 [#allocation2], 4
      %s19 = int_to_ptr.vmem [resolvable:$true] %s18
      %21 = dma.hbm_to_vmem [thread:$0]  %s1, 512, %s19, [#allocation3]
    $region9: #{net_forward.1} parent=1 // pred_fallthru
      _
    // Predicated region
    $region10: #{net_forward.1} parent=1 // pred_check
      _
    $region11: #{net_forward.1} parent=1 // pred_check_branch
      %23 = sbr.rel (0) target = $region13
    $region12: #{net_forward.1} parent=1 // pred_region
      %s25 = ssub.s32 3072, 3072
      %26 = vsyncadd [#allocation5], %s25
      %s27 = sshll.u32 [#allocation4], 4
      %s28 = int_to_ptr.vmem [resolvable:$true] %s27
      %33 = dma.hbm_to_vmem [thread:$0]  %s2, 3072, %s28, [#allocation5], 64, 64, 4
    $region13: #{net_forward.1} parent=1 // pred_fallthru
      _
    // Predicated region
    $region14: #{net_forward.1} parent=1 // pred_check
      _
    $region15: #{net_forward.1} parent=1 // pred_check_branch
      %35 = sbr.rel (0) target = $region17
    $region16: #{net_forward.1} parent=1 // pred_region
      %36 = dma.done [#allocation3], 512
    $region17: #{net_forward.1} parent=1 // pred_fallthru
      _
    // Predicated region
    $region18: #{net_forward.1} parent=1 // pred_check
      _
    $region19: #{net_forward.1} parent=1 // pred_check_branch
      %38 = sbr.rel (0) target = $region21
    $region20: #{net_forward.1} parent=1 // pred_region
      %39 = dma.done [#allocation5], 3072
    $region21: #{net_forward.1} parent=1 // pred_fallthru
      _
    %v41 = vld [vmem:[%s0] sm:$0xff]
    %v42 = vld [vmem:[#allocation2] sm:$0x1f]
    %v43 = vld [vmem:[#allocation2 + $0x8] sm:$0x1f]
    %v44 = vld [vmem:[#allocation2 + $0x10] sm:$0x1f]
    %v45 = vld [vmem:[#allocation2 + $0x18] sm:$0x1f]
    %47 = vset.pattern.permute.xlu0 0
    %48 = vperm.xlu0 %47, %v41
    %v49 = vpop.permute.xlu0 %48
    %v51 = vlaneseq
    %v52 = vshrl.u32 %v51, 7
    %v53 = vsub.s32 0, %v52
    %v54 = vrot.slane %v42, %v53
    %v55 = vlaneseq
    %v56 = vshrl.u32 %v55, 7
    %v57 = vsub.s32 0, %v56
    %v58 = vrot.slane %v43, %v57
    %v59 = vlaneseq
    %v60 = vshrl.u32 %v59, 7
    %v61 = vsub.s32 0, %v60
    %v62 = vrot.slane %v44, %v61
    %v63 = vmul.f32 %v49, %v54
    %v64 = vmul.f32 %v49, %v58
    %v65 = vmul.f32 %v49, %v62
    %v66 = vlaneseq
    %v67 = vshrl.u32 %v66, 7
    %v68 = vsub.s32 4, %v67
    %v69 = vrot.slane %v42, %v68
    %v70 = vlaneseq
    %v71 = vshrl.u32 %v70, 7
    %v72 = vsub.s32 4, %v71
    %v73 = vrot.slane %v43, %v72
    %v74 = vlaneseq
    %v75 = vshrl.u32 %v74, 7
    %v76 = vsub.s32 4, %v75
    %v77 = vrot.slane %v44, %v76
    %v78 = vadd.f32 %v69, %v63
    %v79 = vadd.f32 %v73, %v64
    %v80 = vadd.f32 %v77, %v65
    %81 = vset.pattern.permute.xlu0 1
    %82 = vperm.xlu0 %81, %v41
    %v83 = vpop.permute.xlu0 %82
    %v85 = vlaneseq
    %v86 = vshrl.u32 %v85, 7
    %v87 = vsub.s32 1, %v86
    %v88 = vrot.slane %v42, %v87
    %v89 = vlaneseq
    %v90 = vshrl.u32 %v89, 7
    %v91 = vsub.s32 1, %v90
    %v92 = vrot.slane %v43, %v91
    %v93 = vlaneseq
    %v94 = vshrl.u32 %v93, 7
    %v95 = vsub.s32 1, %v94
    %v96 = vrot.slane %v44, %v95
    %v97 = vmul.f32 %v83, %v88
    %v98 = vmul.f32 %v83, %v92
    %v99 = vmul.f32 %v83, %v96
    %v100 = vadd.f32 %v78, %v97
    %v101 = vadd.f32 %v79, %v98
    %v102 = vadd.f32 %v80, %v99
    %103 = vset.pattern.permute.xlu0 2
    %104 = vperm.xlu0 %103, %v41
    %v105 = vpop.permute.xlu0 %104
    %v107 = vlaneseq
    %v108 = vshrl.u32 %v107, 7
    %v109 = vsub.s32 2, %v108
    %v110 = vrot.slane %v42, %v109
    %v111 = vlaneseq
    %v112 = vshrl.u32 %v111, 7
    %v113 = vsub.s32 2, %v112
    %v114 = vrot.slane %v43, %v113
    %v115 = vlaneseq
    %v116 = vshrl.u32 %v115, 7
    %v117 = vsub.s32 2, %v116
    %v118 = vrot.slane %v44, %v117
    %v119 = vmul.f32 %v105, %v110
    %v120 = vmul.f32 %v105, %v114
    %v121 = vmul.f32 %v105, %v118
    %v122 = vadd.f32 %v100, %v119
    %v123 = vadd.f32 %v101, %v120
    %v124 = vadd.f32 %v102, %v121
    %125 = vset.pattern.permute.xlu0 3
    %126 = vperm.xlu0 %125, %v41
    %v127 = vpop.permute.xlu0 %126
    %v129 = vlaneseq
    %v130 = vshrl.u32 %v129, 7
    %v131 = vsub.s32 3, %v130
    %v132 = vrot.slane %v42, %v131
    %v133 = vlaneseq
    %v134 = vshrl.u32 %v133, 7
    %v135 = vsub.s32 3, %v134
    %v136 = vrot.slane %v43, %v135
    %v137 = vlaneseq
    %v138 = vshrl.u32 %v137, 7
    %v139 = vsub.s32 3, %v138
    %v140 = vrot.slane %v44, %v139
    %v141 = vmul.f32 %v127, %v132
    %v142 = vmul.f32 %v127, %v136
    %v143 = vmul.f32 %v127, %v140
    %v144 = vadd.f32 %v122, %v141
    %v145 = vadd.f32 %v123, %v142
    %v146 = vadd.f32 %v124, %v143
    %v147 = vmax.f32 %v144, 0.0
    %v148 = vmax.f32 %v145, 0.0
    %v149 = vmax.f32 %v146, 0.0
    %v150 = vmin.f32 %v147, 6.0
    %v151 = vmin.f32 %v148, 6.0
    %v152 = vmin.f32 %v149, 6.0
    %v153 = vpack.c.bf16 %v150, %v150
    %v154 = vpack.c.bf16 %v151, %v151
    %v155 = vpack.c.bf16 %v152, %v152
    %v156 = vld [vmem:[#allocation4] sm:$0xf]
    %v157 = vld [vmem:[#allocation4 + $0x4] sm:$0xf]
    %v158 = vld [vmem:[#allocation4 + $0x8] sm:$0xf]
    %v159 = vld [vmem:[#allocation4 + $0xc] sm:$0xf]
    %v160 = vld [vmem:[#allocation4 + $0x10] sm:$0xf]
    %v161 = vld [vmem:[#allocation4 + $0x14] sm:$0xf]
    %v162 = vld [vmem:[#allocation4 + $0x18] sm:$0xf]
    %v163 = vld [vmem:[#allocation4 + $0x1c] sm:$0xf]
    %v164 = vld [vmem:[#allocation4 + $0x20] sm:$0xf]
    %v165 = vld [vmem:[#allocation4 + $0x24] sm:$0xf]
    %v166 = vld [vmem:[#allocation4 + $0x28] sm:$0xf]
    %v167 = vld [vmem:[#allocation4 + $0x2c] sm:$0xf]
    %v168 = vld [vmem:[#allocation4 + $0x30] sm:$0xf]
    %v169 = vld [vmem:[#allocation4 + $0x34] sm:$0xf]
    %v170 = vld [vmem:[#allocation4 + $0x38] sm:$0xf]
    %v171 = vld [vmem:[#allocation4 + $0x3c] sm:$0xf]
    %v172 = vld [vmem:[#allocation4 + $0x40] sm:$0xf]
    %v173 = vld [vmem:[#allocation4 + $0x44] sm:$0xf]
    %v174 = vld [vmem:[#allocation4 + $0x48] sm:$0xf]
    %v175 = vld [vmem:[#allocation4 + $0x4c] sm:$0xf]
    %v176 = vld [vmem:[#allocation4 + $0x50] sm:$0xf]
    %v177 = vld [vmem:[#allocation4 + $0x54] sm:$0xf]
    %v178 = vld [vmem:[#allocation4 + $0x58] sm:$0xf]
    %v179 = vld [vmem:[#allocation4 + $0x5c] sm:$0xf]
    %v180 = vld [vmem:[#allocation4 + $0x60] sm:$0xf]
    %v181 = vld [vmem:[#allocation4 + $0x64] sm:$0xf]
    %v182 = vld [vmem:[#allocation4 + $0x68] sm:$0xf]
    %v183 = vld [vmem:[#allocation4 + $0x6c] sm:$0xf]
    %v184 = vld [vmem:[#allocation4 + $0x70] sm:$0xf]
    %v185 = vld [vmem:[#allocation4 + $0x74] sm:$0xf]
    %v186 = vld [vmem:[#allocation4 + $0x78] sm:$0xf]
    %v187 = vld [vmem:[#allocation4 + $0x7c] sm:$0xf]
    %v188 = vld [vmem:[#allocation4 + $0x80] sm:$0xf]
    %v189 = vld [vmem:[#allocation4 + $0x84] sm:$0xf]
    %v190 = vld [vmem:[#allocation4 + $0x88] sm:$0xf]
    %v191 = vld [vmem:[#allocation4 + $0x8c] sm:$0xf]
    %v192 = vld [vmem:[#allocation4 + $0x90] sm:$0xf]
    %v193 = vld [vmem:[#allocation4 + $0x94] sm:$0xf]
    %v194 = vld [vmem:[#allocation4 + $0x98] sm:$0xf]
    %v195 = vld [vmem:[#allocation4 + $0x9c] sm:$0xf]
    %v196 = vld [vmem:[#allocation4 + $0xa0] sm:$0xf]
    %v197 = vld [vmem:[#allocation4 + $0xa4] sm:$0xf]
    %v198 = vld [vmem:[#allocation4 + $0xa8] sm:$0xf]
    %v199 = vld [vmem:[#allocation4 + $0xac] sm:$0xf]
    %v200 = vld [vmem:[#allocation4 + $0xb0] sm:$0xf]
    %v201 = vld [vmem:[#allocation4 + $0xb4] sm:$0xf]
    %v202 = vld [vmem:[#allocation4 + $0xb8] sm:$0xf]
    %v203 = vld [vmem:[#allocation4 + $0xbc] sm:$0xf]
    %v204 = vlaneseq
    %v205 = vshrl.u32 %v204, 7
    %v206 = vsub.s32 4, %v205
    %v207 = vrot.slane %v45, %v206
    %v256 = vunpack.c.l.b16 %v156
    %v257 = vunpack.c.l.b16 %v157
    %v258 = vunpack.c.l.b16 %v158
    %v259 = vunpack.c.l.b16 %v159
    %v260 = vunpack.c.l.b16 %v160
    %v261 = vunpack.c.l.b16 %v161
    %v262 = vunpack.c.l.b16 %v162
    %v263 = vunpack.c.l.b16 %v163
    %v264 = vunpack.c.l.b16 %v164
    %v265 = vunpack.c.l.b16 %v165
    %v266 = vunpack.c.l.b16 %v166
    %v267 = vunpack.c.l.b16 %v167
    %v268 = vunpack.c.l.b16 %v168
    %v269 = vunpack.c.l.b16 %v169
    %v270 = vunpack.c.l.b16 %v170
    %v271 = vunpack.c.l.b16 %v171
    %v272 = vunpack.c.l.b16 %v172
    %v273 = vunpack.c.l.b16 %v173
    %v274 = vunpack.c.l.b16 %v174
    %v275 = vunpack.c.l.b16 %v175
    %v276 = vunpack.c.l.b16 %v176
    %v277 = vunpack.c.l.b16 %v177
    %v278 = vunpack.c.l.b16 %v178
    %v279 = vunpack.c.l.b16 %v179
    %v280 = vunpack.c.l.b16 %v180
    %v281 = vunpack.c.l.b16 %v181
    %v282 = vunpack.c.l.b16 %v182
    %v283 = vunpack.c.l.b16 %v183
    %v284 = vunpack.c.l.b16 %v184
    %v285 = vunpack.c.l.b16 %v185
    %v286 = vunpack.c.l.b16 %v186
    %v287 = vunpack.c.l.b16 %v187
    %v288 = vunpack.c.l.b16 %v188
    %v289 = vunpack.c.l.b16 %v189
    %v290 = vunpack.c.l.b16 %v190
    %v291 = vunpack.c.l.b16 %v191
    %v292 = vunpack.c.l.b16 %v192
    %v293 = vunpack.c.l.b16 %v193
    %v294 = vunpack.c.l.b16 %v194
    %v295 = vunpack.c.l.b16 %v195
    %v296 = vunpack.c.l.b16 %v196
    %v297 = vunpack.c.l.b16 %v197
    %v298 = vunpack.c.l.b16 %v198
    %v299 = vunpack.c.l.b16 %v199
    %v300 = vunpack.c.l.b16 %v200
    %v301 = vunpack.c.l.b16 %v201
    %v302 = vunpack.c.l.b16 %v202
    %v303 = vunpack.c.l.b16 %v203
    %v304 = vpack.c.b16 %v257, %v256
    %v305 = vpack.c.b16 %v259, %v258
    %v306 = vpack.c.b16 %v261, %v260
    %v307 = vpack.c.b16 %v263, %v262
    %v308 = vpack.c.b16 %v265, %v264
    %v309 = vpack.c.b16 %v267, %v266
    %v310 = vpack.c.b16 %v269, %v268
    %v311 = vpack.c.b16 %v271, %v270
    %v312 = vpack.c.b16 %v273, %v272
    %v313 = vpack.c.b16 %v275, %v274
    %v314 = vpack.c.b16 %v277, %v276
    %v315 = vpack.c.b16 %v279, %v278
    %v316 = vpack.c.b16 %v281, %v280
    %v317 = vpack.c.b16 %v283, %v282
    %v318 = vpack.c.b16 %v285, %v284
    %v319 = vpack.c.b16 %v287, %v286
    %v320 = vpack.c.b16 %v289, %v288
    %v321 = vpack.c.b16 %v291, %v290
    %v322 = vpack.c.b16 %v293, %v292
    %v323 = vpack.c.b16 %v295, %v294
    %v324 = vpack.c.b16 %v297, %v296
    %v325 = vpack.c.b16 %v299, %v298
    %v326 = vpack.c.b16 %v301, %v300
    %v327 = vpack.c.b16 %v303, %v302
    %352 = vmatprep.subr.bf16.mxu0 0
    %353 = vmatpush1.bf16.msra.mxu0 %v311
    %354 = vmatprep.subr.bf16.mxu0 0
    %355 = vmatpush1.bf16.msra.mxu0 %v310
    %356 = vmatprep.subr.bf16.mxu0 0
    %357 = vmatpush1.bf16.msra.mxu0 %v309
    %358 = vmatprep.subr.bf16.mxu0 0
    %359 = vmatpush1.bf16.msra.mxu0 %v308
    %360 = vmatprep.subr.bf16.mxu0 0
    %361 = vmatpush1.bf16.msra.mxu0 %v307
    %362 = vmatprep.subr.bf16.mxu0 0
    %363 = vmatpush1.bf16.msra.mxu0 %v306
    %364 = vmatprep.subr.bf16.mxu0 0
    %365 = vmatpush1.bf16.msra.mxu0 %v305
    %366 = vmatprep.subr.bf16.mxu0 0
    %367 = vmatpush1.bf16.msra.mxu0 %v304
    %368 = vmatprep.subr.bf16.mxu0 0
    %369 = vmatpush2.bf16.msra.mxu0 %v319
    %370 = vmatprep.subr.bf16.mxu0 0
    %371 = vmatpush2.bf16.msra.mxu0 %v318
    %372 = vmatprep.subr.bf16.mxu0 0
    %373 = vmatpush2.bf16.msra.mxu0 %v317
    %374 = vmatprep.subr.bf16.mxu0 0
    %375 = vmatpush2.bf16.msra.mxu0 %v316
    %376 = vmatprep.subr.bf16.mxu0 0
    %377 = vmatpush2.bf16.msra.mxu0 %v315
    %378 = vmatprep.subr.bf16.mxu0 0
    %379 = vmatpush2.bf16.msra.mxu0 %v314
    %380 = vmatprep.subr.bf16.mxu0 0
    %381 = vmatpush2.bf16.msra.mxu0 %v313
    %382 = vmatprep.subr.bf16.mxu0 0
    %383 = vmatpush2.bf16.msra.mxu0 %v312
    %384 = vmatprep.mubr.bf16.mxu0 %v154
    %385 = vmatmul.mubr.bf16.gmra.mxu0 %v153
    %v386 = vpop.f32.mrf.mxu0
    %v387 = vadd.f32 %v207, %v386
    %v388 = vpop.f32.mrf.mxu0
    %v389 = vpop.f32.mrf.mxu0
    %v390 = vpop.f32.mrf.mxu0
    %391 = vdwg.mxu0
    %392 = vmatprep.subr.bf16.mxu0 0
    %393 = vmatpush1.bf16.msra.mxu0 %v327
    %394 = vmatprep.subr.bf16.mxu0 0
    %395 = vmatpush1.bf16.msra.mxu0 %v326
    %396 = vmatprep.subr.bf16.mxu0 0
    %397 = vmatpush1.bf16.msra.mxu0 %v325
    %398 = vmatprep.subr.bf16.mxu0 0
    %399 = vmatpush1.bf16.msra.mxu0 %v324
    %400 = vmatprep.subr.bf16.mxu0 0
    %401 = vmatpush1.bf16.msra.mxu0 %v323
    %402 = vmatprep.subr.bf16.mxu0 0
    %403 = vmatpush1.bf16.msra.mxu0 %v322
    %404 = vmatprep.subr.bf16.mxu0 0
    %405 = vmatpush1.bf16.msra.mxu0 %v321
    %406 = vmatprep.subr.bf16.mxu0 0
    %407 = vmatpush1.bf16.msra.mxu0 %v320
    %408 = vmatprep.subr.bf16.mxu0 0
    %409 = vmatpush2.bf16.msra.mxu0 0
    %410 = vmatprep.subr.bf16.mxu0 0
    %411 = vmatpush2.bf16.msra.mxu0 0
    %412 = vmatprep.subr.bf16.mxu0 0
    %413 = vmatpush2.bf16.msra.mxu0 0
    %414 = vmatprep.subr.bf16.mxu0 0
    %415 = vmatpush2.bf16.msra.mxu0 0
    %416 = vmatprep.subr.bf16.mxu0 0
    %417 = vmatpush2.bf16.msra.mxu0 0
    %418 = vmatprep.subr.bf16.mxu0 0
    %419 = vmatpush2.bf16.msra.mxu0 0
    %420 = vmatprep.subr.bf16.mxu0 0
    %421 = vmatpush2.bf16.msra.mxu0 0
    %422 = vmatprep.subr.bf16.mxu0 0
    %423 = vmatpush2.bf16.msra.mxu0 0
    %424 = vmatprep.mubr.bf16.mxu0 0
    %425 = vmatmul.mubr.bf16.gmra.mxu0 %v155
    %v426 = vpop.f32.mrf.mxu0
    %v427 = vadd.f32 %v387, %v426
    %v428 = vpop.f32.mrf.mxu0
    %v429 = vpop.f32.mrf.mxu0
    %v430 = vpop.f32.mrf.mxu0
    %431 = vdwg.mxu0
    %v432 = vtanh.pop %v427
    %v433 = vmul.f32 %v432, 2.0
    %v434 = vmax.f32 %v427, 0.0
    %v435 = vand.u32 2147483647, %v427
    %v436 = vsub.f32 0.0, %v435
    %v437 = vmul.f32 %v436, 1.442695
    %v438 = vpow.pop %v437
    %v439 = vadd.f32 %v438, 1.0
    %v440 = vlog2.pop %v439
    %v441 = vmul.f32 %v440, 0.6931472
    %v442 = vmul.f32 -0.5, %v438
    %v443 = vadd.f32 %v442, 1.0
    %v444 = vmul.f32 %v443, %v438
    %v445 = vand.u32 2147483647, %v438
    %vm446 = vcmp.lt.f32.partialorder %v445, 0.0004427343
    %v447 = vsel %vm446, %v444, %v441
    %v448 = vadd.f32 %v434, %v447
    %v449 = vadd.f32 %v448, 0.001
    %v450 = vlaneseq
    %v451 = vand.u32 %v450, 127
    %vm452 = vcmp.lt.s32.totalorder %v451, 2
    %vm453 = vcmp.lt.s32.totalorder %v451, 4
    %v454 = vsel %vm453, 1, 0
    %vm455 = vcmp.eq.s32.totalorder %v454, 1
    %v456 = vsel %vm455, %v449, %v427
    %v457 = vsel %vm452, 1, 0
    %vm458 = vcmp.eq.s32.totalorder %v457, 1
    %v459 = vsel %vm458, %v433, %v456
    %v460 = vpack.c.bf16 %v459, %v459
    %461 = vst [vmem:[%s3] sm:$0xf] %v460
    // Predicated region
    $region22: #{net_forward.1} parent=1 // pred_check
      _
    $region23: #{net_forward.1} parent=1 // pred_check_branch
      %463 = sbr.rel (0) target = $region25
    $region24: #{net_forward.1} parent=1 // pred_region
      _
    $region25: #{net_forward.1} parent=1 // pred_fallthru
      _
    // Predicated region
    $region26: #{net_forward.1} parent=1 // pred_check
      _
    $region27: #{net_forward.1} parent=1 // pred_check_branch
      %465 = sbr.rel (0) target = $region29
    $region28: #{net_forward.1} parent=1 // pred_region
      _
    $region29: #{net_forward.1} parent=1 // pred_fallthru
      _
    %466 = vsyncpa [#allocation3], 1
    %467 = vsyncpa [#allocation5], 1

</llo_original>
